<compile_context>
chip_gen: v5e
topology: v5e:2x2
jax: 0.10.0
libtpu: 0.0.40
codegen_flags: <defaults>
</compile_context>

<pallas_src>
import functools
import math

import jax
import jax.numpy as jnp
from jax.experimental import pallas as pl
from jax.experimental.pallas import tpu as pltpu


# ----------------------------------------------------------------------------
# Shared in-kernel compute helpers (operate on loaded values, not Refs)
# ----------------------------------------------------------------------------

def _weighted_hiddens_compute(hw, q, r_row, num_window):
    # hw: (W*N, H) hidden window (torch.cat(self.hiddens, dim=0) layout)
    # q : (H, H),  r_row: (1, H)  (r transposed so the projection is a lane reduce)
    W = num_window
    WN, H = hw.shape
    N = WN // W
    # single big MXU matmul instead of W tiny batched ones
    t = jnp.tanh(jnp.dot(hw, q, preferred_element_type=jnp.float32))        # (W*N, H)
    # e = tanh(hw @ Q) @ r  done as VPU multiply + lane reduction (MXU stays free)
    e = jnp.sum(t.reshape(W, N, H) * r_row[None], axis=-1)                  # (W, N)
    # softmax over the window dimension (torch dim=0)
    e_max = jnp.max(e, axis=0, keepdims=True)
    p = jnp.exp(e - e_max)
    a = p / jnp.sum(p, axis=0, keepdims=True)                               # (W, N)
    # s = mean over window of a * hidden_window
    return jnp.mean(a[:, :, None] * hw.reshape(W, N, H), axis=0)            # (N, H)


def _gru_compute(x, h, wir, wiz, win, whr, whz, whn, br, bz, bin_, bhn):
    # PyTorch nn.GRUCell semantics with gate-separated (H,H) weights
    # (no lane-offset slicing of a (N, 3H) tensor).
    r = jax.nn.sigmoid(jnp.dot(x, wir, preferred_element_type=jnp.float32)
                       + jnp.dot(h, whr, preferred_element_type=jnp.float32) + br)
    z = jax.nn.sigmoid(jnp.dot(x, wiz, preferred_element_type=jnp.float32)
                       + jnp.dot(h, whz, preferred_element_type=jnp.float32) + bz)
    n = jnp.tanh(jnp.dot(x, win, preferred_element_type=jnp.float32) + bin_
                 + r * (jnp.dot(h, whn, preferred_element_type=jnp.float32) + bhn))
    return (1.0 - z) * n + z * h


# ----------------------------------------------------------------------------
# Pallas kernels
# ----------------------------------------------------------------------------

def _linear_kernel(x_ref, wt_ref, b_ref, o_ref):
    # x: (N, F), wt: (F, H) (pre-transposed once in __init__), b: (1, H)
    o_ref[...] = (jnp.dot(x_ref[...], wt_ref[...],
                          preferred_element_type=jnp.float32) + b_ref[...])


def _weighted_hiddens_kernel(hw_ref, q_ref, rrow_ref, s_ref, *, num_window):
    s_ref[...] = _weighted_hiddens_compute(hw_ref[...], q_ref[...],
                                           rrow_ref[...], num_window)


def _gru_cell_kernel(x_ref, h_ref, wir_ref, wiz_ref, win_ref,
                     whr_ref, whz_ref, whn_ref,
                     br_ref, bz_ref, bin_ref, bhn_ref, o_ref):
    o_ref[...] = _gru_compute(x_ref[...], h_ref[...],
                              wir_ref[...], wiz_ref[...], win_ref[...],
                              whr_ref[...], whz_ref[...], whn_ref[...],
                              br_ref[...], bz_ref[...], bin_ref[...], bhn_ref[...])


def _fused_encode_kernel(feat_ref, lwt_ref, lb_ref,
                         hw_ref, q_ref, rrow_ref,
                         wir_ref, wiz_ref, win_ref,
                         whr_ref, whz_ref, whn_ref,
                         br_ref, bz_ref, bin_ref, bhn_ref,
                         x_ref, s_ref, z_ref, *, num_window):
    # Fused: linear -> weighted_hiddens -> GRU, intermediates never leave VMEM.
    x = (jnp.dot(feat_ref[...], lwt_ref[...],
                 preferred_element_type=jnp.float32) + lb_ref[...])
    s = _weighted_hiddens_compute(hw_ref[...], q_ref[...], rrow_ref[...], num_window)
    z = _gru_compute(x, s,
                     wir_ref[...], wiz_ref[...], win_ref[...],
                     whr_ref[...], whz_ref[...], whn_ref[...],
                     br_ref[...], bz_ref[...], bin_ref[...], bhn_ref[...])
    x_ref[...] = x
    s_ref[...] = s
    z_ref[...] = z


def _vmem_specs(n):
    return [pl.BlockSpec(memory_space=pltpu.MemorySpace.VMEM) for _ in range(n)]


# ----------------------------------------------------------------------------
# Wrappers
# ----------------------------------------------------------------------------

def linear_pallas(x, w_t, b2d):
    N = x.shape[0]
    H = w_t.shape[1]
    return pl.pallas_call(
        _linear_kernel,
        out_shape=jax.ShapeDtypeStruct((N, H), jnp.float32),
        in_specs=_vmem_specs(3),
        out_specs=pl.BlockSpec(memory_space=pltpu.MemorySpace.VMEM),
    )(x, w_t, b2d)


def weighted_hiddens_pallas(hidden_window, Q, r_row, num_window):
    # hidden_window: (num_window * num_nodes, nhid) exactly as torch.cat produces.
    N = hidden_window.shape[0] // num_window
    H = Q.shape[0]
    return pl.pallas_call(
        functools.partial(_weighted_hiddens_kernel, num_window=num_window),
        out_shape=jax.ShapeDtypeStruct((N, H), jnp.float32),
        in_specs=_vmem_specs(3),
        out_specs=pl.BlockSpec(memory_space=pltpu.MemorySpace.VMEM),
    )(hidden_window, Q, r_row)


def gru_cell_pallas(x, h, gates):
    # gates: dict of pre-split / pre-transposed GRU parameters (hoisted in __init__)
    N, H = h.shape
    return pl.pallas_call(
        _gru_cell_kernel,
        out_shape=jax.ShapeDtypeStruct((N, H), jnp.float32),
        in_specs=_vmem_specs(12),
        out_specs=pl.BlockSpec(memory_space=pltpu.MemorySpace.VMEM),
    )(x, h,
      gates["wir"], gates["wiz"], gates["win"],
      gates["whr"], gates["whz"], gates["whn"],
      gates["br"], gates["bz"], gates["bin"], gates["bhn"])


def fused_encode_pallas(feat, lw_t, lb2d, hidden_window, Q, r_row, gates, num_window):
    N = feat.shape[0]
    H = Q.shape[0]
    out_shape = (jax.ShapeDtypeStruct((N, H), jnp.float32),
                 jax.ShapeDtypeStruct((N, H), jnp.float32),
                 jax.ShapeDtypeStruct((N, H), jnp.float32))
    return pl.pallas_call(
        functools.partial(_fused_encode_kernel, num_window=num_window),
        out_shape=out_shape,
        in_specs=_vmem_specs(16),
        out_specs=tuple(_vmem_specs(3)),
    )(feat, lw_t, lb2d, hidden_window, Q, r_row,
      gates["wir"], gates["wiz"], gates["win"],
      gates["whr"], gates["whz"], gates["whn"],
      gates["br"], gates["bz"], gates["bin"], gates["bhn"])


# ----------------------------------------------------------------------------
# Model (parameter container + forward)
# ----------------------------------------------------------------------------

def glorot(key, shape):
    fan_in, fan_out = shape[-2], shape[-1]
    stdv = math.sqrt(6.0 / (fan_in + fan_out))
    return jax.random.uniform(key, shape, jnp.float32, -stdv, stdv)


class BaseModelPallas:
    def __init__(self, num_nodes, use_gru, nhid, window, nfeat, model, key):
        keys = jax.random.split(key, 10)
        self.num_nodes = num_nodes
        self.nhid = nhid
        self.nfeat = nfeat
        self.num_window = window
        self.model_type = model[:3]
        self.use_gru = use_gru

        # Parameters (glorot, matching reset_parameter()) --------------------
        self.feat = glorot(keys[0], (num_nodes, nfeat))
        self.Q = glorot(keys[1], (nhid, nhid))
        self.r = glorot(keys[2], (nhid, 1))
        self.linear_w = glorot(keys[3], (nhid, nfeat))          # torch layout (out, in)
        bb = 1.0 / math.sqrt(nfeat)                             # torch Linear bias init
        self.linear_b = jax.random.uniform(keys[4], (nhid,), jnp.float32, -bb, bb)
        self.hidden_initial = glorot(keys[5], (num_nodes, nhid))

        # Hoisted layouts: transposes / reshapes done ONCE, not per call -----
        self.linear_w_t = jnp.transpose(self.linear_w)          # (nfeat, nhid)
        self.linear_b2d = self.linear_b.reshape(1, nhid)
        self.r_row = self.r.reshape(1, nhid)                    # r^T for lane reduce

        self.gates = None
        if use_gru:
            gb = 1.0 / math.sqrt(nhid)
            self.w_ih = jax.random.uniform(keys[6], (3 * nhid, nhid), jnp.float32, -gb, gb)
            self.w_hh = jax.random.uniform(keys[7], (3 * nhid, nhid), jnp.float32, -gb, gb)
            self.b_ih = jax.random.uniform(keys[8], (3 * nhid,), jnp.float32, -gb, gb)
            self.b_hh = jax.random.uniform(keys[9], (3 * nhid,), jnp.float32, -gb, gb)
            H = nhid
            # Per-gate, pre-transposed weights + pre-summed r/z biases (hoisted).
            self.gates = {
                "wir": jnp.transpose(self.w_ih[:H]),
                "wiz": jnp.transpose(self.w_ih[H:2 * H]),
                "win": jnp.transpose(self.w_ih[2 * H:]),
                "whr": jnp.transpose(self.w_hh[:H]),
                "whz": jnp.transpose(self.w_hh[H:2 * H]),
                "whn": jnp.transpose(self.w_hh[2 * H:]),
                "br": (self.b_ih[:H] + self.b_hh[:H]).reshape(1, H),
                "bz": (self.b_ih[H:2 * H] + self.b_hh[H:2 * H]).reshape(1, H),
                "bin": self.b_ih[2 * H:].reshape(1, H),
                "bhn": self.b_hh[2 * H:].reshape(1, H),
            }

        self.hiddens = None

    def init_hiddens(self):
        self.hiddens = [self.hidden_initial] * self.num_window
        return self.hiddens

    # --- module methods as Pallas kernels -----------------------------------
    def weighted_hiddens(self, hidden_window):
        return weighted_hiddens_pallas(hidden_window, self.Q, self.r_row,
                                       self.num_window)

    def gru(self, x, h):
        if not self.use_gru:
            return x
        return gru_cell_pallas(x, h, self.gates)

    def forward(self, edge_index, x=None, weight=None):
        if x is None:
            x = linear_pallas(self.feat, self.linear_w_t, self.linear_b2d)
        else:
            x = linear_pallas(x, self.linear_w_t, self.linear_b2d)
        # TODO(synk): 'Dyn'/'GRU' branches need layer1/layer2/act/dropout which are
        # only defined in subclasses of BaseModel; not implemented here.
        return x

    def encode_fused(self, hidden_window):
        """linear -> weighted_hiddens -> GRU in ONE pallas_call (VMEM intermediates)."""
        if not self.use_gru:
            x = self.forward(None)
            s = self.weighted_hiddens(hidden_window)
            return x, s, x
        return fused_encode_pallas(self.feat, self.linear_w_t, self.linear_b2d,
                                   hidden_window, self.Q, self.r_row,
                                   self.gates, self.num_window)


# ----------------------------------------------------------------------------
# References (pure JAX) for correctness checking
# ----------------------------------------------------------------------------

def linear_ref(x, w, b):
    return x @ w.T + b


def weighted_hiddens_ref(hidden_window, Q, r, W, nhid):
    e = jnp.tanh(hidden_window @ Q) @ r                 # (W*N, 1)
    e = e.reshape(W, -1)                                # (W, N)
    a = jax.nn.softmax(e, axis=0)[:, :, None]           # (W, N, 1)
    hw = hidden_window.reshape(W, -1, nhid)
    return jnp.mean(a * hw, axis=0)


def gru_ref(x, h, w_ih, w_hh, b_ih, b_hh):
    H = h.shape[-1]
    gi = x @ w_ih.T + b_ih
    gh = h @ w_hh.T + b_hh
    r = jax.nn.sigmoid(gi[:, :H] + gh[:, :H])
    z = jax.nn.sigmoid(gi[:, H:2 * H] + gh[:, H:2 * H])
    n = jnp.tanh(gi[:, 2 * H:] + r * gh[:, 2 * H:])
    return (1.0 - z) * n + z * h


if __name__ == "__main__":
    num_nodes, nfeat, nhid, window = 64, 16, 32, 4
    key = jax.random.PRNGKey(0)

    model = BaseModelPallas(num_nodes=num_nodes, use_gru=True, nhid=nhid,
                            window=window, nfeat=nfeat, model="HTGN", key=key)
    model.init_hiddens()
    edge_index = jnp.zeros((2, 8), jnp.int32)  # unused by BaseModel.forward

    # --- forward pass (x=None -> linear(feat)) -------------------------------
    out = model.forward(edge_index, x=None)
    jax.block_until_ready(out)
    x_ref = linear_ref(model.feat, model.linear_w, model.linear_b)
    assert out.shape == (num_nodes, nhid)
    assert jnp.allclose(out, x_ref, atol=1e-5, rtol=1e-5)

    # --- fused linear -> weighted_hiddens -> GRU (single pallas_call) --------
    hidden_window = jnp.concatenate(model.hiddens, axis=0)      # (W*N, H)
    x_f, s_f, z_f = model.encode_fused(hidden_window)
    jax.block_until_ready(z_f)
    s_ref = weighted_hiddens_ref(hidden_window, model.Q, model.r, window, nhid)
    z_ref = gru_ref(x_ref, s_ref, model.w_ih, model.w_hh, model.b_ih, model.b_hh)
    assert jnp.allclose(x_f, x_ref, atol=1e-5, rtol=1e-5)
    assert jnp.allclose(s_f, s_ref, atol=1e-5, rtol=1e-5)
    assert jnp.allclose(z_f, z_ref, atol=1e-5, rtol=1e-5)

    # --- standalone module methods (optimized bodies) ------------------------
    s = model.weighted_hiddens(hidden_window)
    z = model.gru(out, s)
    jax.block_until_ready(z)
    assert jnp.allclose(s, s_ref, atol=1e-5, rtol=1e-5)
    assert jnp.allclose(z, z_ref, atol=1e-5, rtol=1e-5)

    print("KERNEL_OK")
</pallas_src>

<mosaic_0001>
module attributes {stable_mosaic.version = 11 : i64} {
  func.func @_linear_kernel(%arg0: memref<64x16xf32, #tpu.memory_space<vmem>>, %arg1: memref<16x32xf32, #tpu.memory_space<vmem>>, %arg2: memref<1x32xf32, #tpu.memory_space<vmem>>, %arg3: memref<64x32xf32, #tpu.memory_space<vmem>>) attributes {dimension_semantics = [], scalar_prefetch = 0 : i64, scratch_operands = 0 : i64, tpu.core_type = #tpu.core_type<tc>} {
    %c0 = arith.constant 0 : index
    %c0_0 = arith.constant 0 : index
    %0 = vector.load %arg0[%c0, %c0_0] : memref<64x16xf32, #tpu.memory_space<vmem>>, vector<64x16xf32>
    %c0_1 = arith.constant 0 : index
    %c0_2 = arith.constant 0 : index
    %1 = vector.load %arg1[%c0_1, %c0_2] : memref<16x32xf32, #tpu.memory_space<vmem>>, vector<16x32xf32>
    %cst = arith.constant dense<0.000000e+00> : vector<64x32xf32>
    %2 = tpu.matmul %0, %1, %cst {dimension_numbers = #tpu.dot_dimension_numbers<[1], [0], [0], [1], [0, 0, 1, 1], [], []>} : vector<64x16xf32>, vector<16x32xf32>, vector<64x32xf32> -> vector<64x32xf32>
    %c0_3 = arith.constant 0 : index
    %c0_4 = arith.constant 0 : index
    %3 = vector.load %arg2[%c0_3, %c0_4] : memref<1x32xf32, #tpu.memory_space<vmem>>, vector<1x32xf32>
    %4 = vector.broadcast %3 : vector<1x32xf32> to vector<64x32xf32>
    %5 = arith.addf %2, %4 : vector<64x32xf32>
    %c0_5 = arith.constant 0 : index
    %c0_6 = arith.constant 0 : index
    %6 = vector.load %arg3[%c0_5, %c0_6] : memref<64x32xf32, #tpu.memory_space<vmem>>, vector<64x32xf32>
    tpu.vector_store %arg3[%c0_5, %c0_6], %5 {strides = array<i32>} : memref<64x32xf32, #tpu.memory_space<vmem>>, vector<64x32xf32>,
    return
  }
}

</mosaic_0001>

<llo_original>
// kernel: tpu_custom_call.1
$region0: #{tpu_custom_call.1}
  #allocation0 [shape = 'u32[]', space=smem, size = 0x4, offset = 0x4, fixed_abs, tag = 'smem constant byte address 0x4 - core index']
  #allocation1 [shape = 'u32[72,128]{1,0:T(1,128)}', space=vmem, size = 0x9000, scoped, tag = 'internal scratch']
  %s0 = inlined_call_operand.vmem [shape: f32[64,16], index: 0, kind: input, shape index: {}]
  %s1 = inlined_call_operand.vmem [shape: f32[16,32], index: 1, kind: input, shape index: {}]
  %s2 = inlined_call_operand.vmem [shape: f32[1,32], index: 2, kind: input, shape index: {}]
  %s3 = inlined_call_operand.vmem [shape: f32[64,32], index: 3, kind: output, shape index: {}]
  %s4 = sld [smem:[#allocation0]]
  $region22: #{tpu_custom_call.1} parent=0
    _
  %s6 = ssub.s32 1, %s4
  %s7 = scalar_select 0, %s6, %s4
  // Predicated region
  $region2: #{tpu_custom_call.1} parent=0 // pred_check
    _
  $region3: #{tpu_custom_call.1} parent=0 // pred_check_branch
    %9 = sbr.rel (0) target = $region5
  $region4: #{tpu_custom_call.1} parent=0 // pred_region
    _
  $region5: #{tpu_custom_call.1} parent=0 // pred_fallthru
    _
  // Predicated region
  $region6: #{tpu_custom_call.1} parent=0 // pred_check
    _
  $region7: #{tpu_custom_call.1} parent=0 // pred_check_branch
    %11 = sbr.rel (0) target = $region9
  $region8: #{tpu_custom_call.1} parent=0 // pred_region
    _
  $region9: #{tpu_custom_call.1} parent=0 // pred_fallthru
    _
  // Predicated region
  $region10: #{tpu_custom_call.1} parent=0 // pred_check
    _
  $region11: #{tpu_custom_call.1} parent=0 // pred_check_branch
    %13 = sbr.rel (0) target = $region13
  $region12: #{tpu_custom_call.1} parent=0 // pred_region
    _
  $region13: #{tpu_custom_call.1} parent=0 // pred_fallthru
    _
  %v14 = vld [vmem:[%s0] sm:$0xff]
  %v15 = vld [vmem:[%s0 + $0x8] sm:$0xff]
  %v16 = vld [vmem:[%s0 + $0x10] sm:$0xff]
  %v17 = vld [vmem:[%s0 + $0x18] sm:$0xff]
  %v18 = vld [vmem:[%s0 + $0x20] sm:$0xff]
  %v19 = vld [vmem:[%s0 + $0x28] sm:$0xff]
  %v20 = vld [vmem:[%s0 + $0x30] sm:$0xff]
  %v21 = vld [vmem:[%s0 + $0x38] sm:$0xff]
  %v22 = vld [vmem:[%s1] sm:$0xff]
  %v23 = vld [vmem:[%s1 + $0x8] sm:$0xff]
  %v24 = vld [vmem:[%s2] sm:$0x1]
  %v26 = vperm.slane %v24, 0
  %vm28 = vcmask 130048
  %v30 = vsel %vm28, %v14, 0
  %v33 = vsel %vm28, %v15, 0
  %v36 = vsel %vm28, %v16, 0
  %v39 = vsel %vm28, %v17, 0
  %v42 = vsel %vm28, %v18, 0
  %v45 = vsel %vm28, %v19, 0
  %v48 = vsel %vm28, %v20, 0
  %v51 = vsel %vm28, %v21, 0
  %53 = vmatpush.msra.mxu0 0.0
  %54 = vmatpush.msra.mxu0 0.0
  %55 = vmatpush.msra.mxu0 0.0
  %56 = vmatpush.msra.mxu0 0.0
  %57 = vmatpush.msra.mxu0 0.0
  %58 = vmatpush.msra.mxu0 0.0
  %59 = vmatpush.msra.mxu0 0.0
  %60 = vmatpush.msra.mxu0 0.0
  %61 = vmatpush.msra.mxu0 0.0
  %62 = vmatpush.msra.mxu0 0.0
  %63 = vmatpush.msra.mxu0 0.0
  %64 = vmatpush.msra.mxu0 0.0
  %65 = vmatpush.msra.mxu0 0.0
  %66 = vmatpush.msra.mxu0 0.0
  %67 = vmatpush.msra.mxu0 %v23
  %68 = vmatpush.msra.mxu0 %v22
  %69 = vmatmul.f32.gmra.mxu0 %v30
  %v70 = vpop.f32.mrf.mxu0
  %v71 = vadd.f32 %v26, %v70
  %72 = vmatmul.f32.gmra.mxu0 %v33
  %v73 = vpop.f32.mrf.mxu0
  %v74 = vadd.f32 %v26, %v73
  %75 = vmatmul.f32.gmra.mxu0 %v36
  %v76 = vpop.f32.mrf.mxu0
  %v77 = vadd.f32 %v26, %v76
  %78 = vmatmul.f32.gmra.mxu0 %v39
  %v79 = vpop.f32.mrf.mxu0
  %v80 = vadd.f32 %v26, %v79
  %81 = vmatmul.f32.gmra.mxu0 %v42
  %v82 = vpop.f32.mrf.mxu0
  %v83 = vadd.f32 %v26, %v82
  %84 = vmatmul.f32.gmra.mxu0 %v45
  %v85 = vpop.f32.mrf.mxu0
  %v86 = vadd.f32 %v26, %v85
  %87 = vmatmul.f32.gmra.mxu0 %v48
  %v88 = vpop.f32.mrf.mxu0
  %v89 = vadd.f32 %v26, %v88
  %90 = vmatmul.f32.gmra.mxu0 %v51
  %v91 = vpop.f32.mrf.mxu0
  %v92 = vadd.f32 %v26, %v91
  %93 = vdwg.mxu0
  %vm94 = vcmask 261120
  %95 = vst.msk [vmem:[%s3] sm:$0xff] %vm94, %v71
  %96 = vst.msk [vmem:[%s3 + $0x8] sm:$0xff] %vm94, %v74
  %97 = vst.msk [vmem:[%s3 + $0x10] sm:$0xff] %vm94, %v77
  %98 = vst.msk [vmem:[%s3 + $0x18] sm:$0xff] %vm94, %v80
  %99 = vst.msk [vmem:[%s3 + $0x20] sm:$0xff] %vm94, %v83
  %100 = vst.msk [vmem:[%s3 + $0x28] sm:$0xff] %vm94, %v86
  %101 = vst.msk [vmem:[%s3 + $0x30] sm:$0xff] %vm94, %v89
  %102 = vst.msk [vmem:[%s3 + $0x38] sm:$0xff] %vm94, %v92
  // Predicated region
  $region14: #{tpu_custom_call.1} parent=0 // pred_check
    _
  $region15: #{tpu_custom_call.1} parent=0 // pred_check_branch
    %104 = sbr.rel (0) target = $region17
  $region16: #{tpu_custom_call.1} parent=0 // pred_region
    _
  $region17: #{tpu_custom_call.1} parent=0 // pred_fallthru
    _
  // Predicated region
  $region18: #{tpu_custom_call.1} parent=0 // pred_check
    _
  $region19: #{tpu_custom_call.1} parent=0 // pred_check_branch
    %106 = sbr.rel (0) target = $region21
  $region20: #{tpu_custom_call.1} parent=0 // pred_region
    _
  $region21: #{tpu_custom_call.1} parent=0 // pred_fallthru
    _

</llo_original>
